<compile_context>
chip_gen: v7x
topology: tpu7x:2x2x1
jax: 0.10.0
libtpu: 0.0.40
codegen_flags: <defaults>
</compile_context>

<pallas_src>
import functools

import jax
import jax.numpy as jnp
from jax.experimental import pallas as pl
from jax.experimental.pallas import tpu as pltpu


def _round_up(x, m):
    return ((x + m - 1) // m) * m


# ---------------------------------------------------------------------------
# Pallas kernel: fused cls_pred / bbox_pred (Conv1d, kernel_size=1) heads
# ---------------------------------------------------------------------------
def _roi_heads_pred_kernel(x_ref, w_ref, b_ref, cls_ref, box_ref, *, ccls_p):
    # x_ref:   (Cin, TL)      features tile for one image (batch dim squeezed)
    # w_ref:   (Ctot, Cin)    fused [cls; box] weight (kernel_size=1 squeezed)
    # b_ref:   (Ctot, 1)      fused bias
    # cls_ref: (Ccls_p, TL)   class-logit tile
    # box_ref: (Cbox_p, TL)   box-regression tile
    x = x_ref[...]
    y = jnp.dot(w_ref[...], x, preferred_element_type=jnp.float32)
    y = y + b_ref[...]                       # single lane-broadcast bias add
    cls_ref[...] = y[:ccls_p, :].astype(cls_ref.dtype)   # sublane-aligned slice
    box_ref[...] = y[ccls_p:, :].astype(box_ref.dtype)


def roi_heads_pred(features, w_cls, b_cls, w_box, b_box, *,
                   vmem_tile_budget_bytes=20 << 20):
    """Fused kernel_size=1 Conv1d heads.

    features: (N, Cin, L)
    w_cls:    (Ccls, Cin), b_cls: (Ccls,)
    w_box:    (Cbox, Cin), b_box: (Cbox,)
    Returns (class_logits (N, Ccls, L), box_regression (N, Cbox, L)).
    """
    N, Cin, L = features.shape
    Ccls = w_cls.shape[0]
    Cbox = w_box.shape[0]
    dt = features.dtype
    itemsize = jnp.dtype(dt).itemsize

    # Sublane multiple for the fused-weight split point (8 rows/vreg f32,
    # 16 for bf16) so the in-kernel row slice needs no layout copy.
    sub = 16 if itemsize == 2 else 8
    ccls_p = _round_up(Ccls, sub)
    cbox_p = _round_up(Cbox, sub)
    ctot = ccls_p + cbox_p

    # Fused weight / bias (zero rows in padding regions, sliced off later).
    w_all = jnp.concatenate([
        jnp.pad(w_cls.astype(dt), ((0, ccls_p - Ccls), (0, 0))),
        jnp.pad(w_box.astype(dt), ((0, cbox_p - Cbox), (0, 0))),
    ], axis=0)
    b_all = jnp.concatenate([
        jnp.pad(b_cls.astype(jnp.float32), (0, ccls_p - Ccls)),
        jnp.pad(b_box.astype(jnp.float32), (0, cbox_p - Cbox)),
    ], axis=0).reshape(ctot, 1)

    # Lane-dense outputs: L < 128 would force masked partial stores, so pad L
    # up to a full 128-lane width; padded columns are sliced off afterwards.
    x = features
    l_work = L
    if L < 128:
        l_work = 128
        x = jnp.pad(features, ((0, 0), (0, 0), (0, l_work - L)))

    # L tile: largest multiple of 128 whose double-buffered in+out footprint
    # stays under the per-step VMEM budget (re-derived to fit v7x's 64 MiB).
    per_col_bytes = 2 * (Cin + ctot) * itemsize          # dbl-buffered in + out
    tile_cap = max(128, (vmem_tile_budget_bytes // per_col_bytes) // 128 * 128)
    if l_work <= tile_cap:
        tile_l = l_work          # full-L block (valid: equals full array dim)
    else:
        tile_l = tile_cap        # multiple of 128 -> lane-dense stores
    n_l = pl.cdiv(l_work, tile_l)

    # Keep both v7x TensorCores busy even when N == 1 and L fits one tile.
    if N * n_l < 2 and l_work >= 256:
        tile_l = _round_up(pl.cdiv(l_work, 2), 128)
        n_l = pl.cdiv(l_work, tile_l)

    grid = (N, n_l)

    # Explicit scoped-VMEM limit sized from the actual block footprint.
    blk_bytes = (2 * Cin * tile_l * itemsize             # x (double-buffered)
                 + 2 * ctot * tile_l * itemsize          # outputs (double-buffered)
                 + 2 * ctot * Cin * itemsize             # fused weight
                 + 2 * ctot * 4)                         # bias
    vmem_limit = int(min(max(blk_bytes + (8 << 20), 32 << 20), 56 << 20))

    kernel = functools.partial(_roi_heads_pred_kernel, ccls_p=ccls_p)

    # TODO(synk): for very large heads on v7x, mark the grid-invariant weight/
    # bias specs pipeline_mode=pl.Buffered(1) so constants are not
    # double-buffered; omitted here for compatibility with older jax.
    cls_out, box_out = pl.pallas_call(
        kernel,
        out_shape=(
            jax.ShapeDtypeStruct((N, ccls_p, l_work), dt),
            jax.ShapeDtypeStruct((N, cbox_p, l_work), dt),
        ),
        grid=grid,
        in_specs=[
            pl.BlockSpec((None, Cin, tile_l), lambda n, l: (n, 0, l)),
            pl.BlockSpec((ctot, Cin), lambda n, l: (0, 0)),
            pl.BlockSpec((ctot, 1), lambda n, l: (0, 0)),
        ],
        out_specs=(
            pl.BlockSpec((None, ccls_p, tile_l), lambda n, l: (n, 0, l)),
            pl.BlockSpec((None, cbox_p, tile_l), lambda n, l: (n, 0, l)),
        ),
        compiler_params=pltpu.CompilerParams(
            dimension_semantics=("parallel", "parallel"),
            vmem_limit_bytes=vmem_limit),
    )(x, w_all, b_all)

    # Strip row (head) padding and lane (L) padding.
    return cls_out[:, :Ccls, :L], box_out[:, :Cbox, :L]


# ---------------------------------------------------------------------------
# Layout plumbing (mirrors the PyTorch reference; pure reshapes, no compute)
# ---------------------------------------------------------------------------
def permute_and_flatten(layer, N, A, C, W):
    layer = layer.reshape(N, A, C, W)
    layer = jnp.transpose(layer, (0, 3, 1, 2))   # (N, W, A, C)
    return layer.reshape(N, -1, C)               # (N, W*A, C)


def concat_box_prediction_layers(box_cls, box_regression, num_class):
    N, _, W = box_cls.shape
    Ax2C = box_regression.shape[1]
    C = 1 + num_class
    A = Ax2C // C // 2
    cls = permute_and_flatten(box_cls, N, A, C, W)              # (N, W*A, C)
    reg = permute_and_flatten(box_regression, N, A, 2 * C, W)   # (N, W*A, 2C)
    return cls, reg


def cat_res(class_logits, box_regression):
    # torch: concatenate the per-image tensors along dim 0
    N, WA, C = class_logits.shape
    C2 = box_regression.shape[-1]
    return class_logits.reshape(N * WA, C), box_regression.reshape(N * WA, C2)


def roi_heads_forward(features, w_cls, b_cls, w_box, b_box, num_class):
    """Eval-mode RoIHeads.forward up to (class_logits, box_regression)."""
    cls, box = roi_heads_pred(features, w_cls, b_cls, w_box, b_box)
    cls, box = concat_box_prediction_layers(cls, box, num_class)
    cls, box = cat_res(cls, box)
    # TODO(synk): postprocess_detections (softmax + decode + NMS + top-k) is
    #             dynamically shaped per image and is intentionally omitted.
    return cls, box


# ---------------------------------------------------------------------------
# Pure-JAX reference (mirrors the PyTorch code path)
# ---------------------------------------------------------------------------
def _reference(features, w_cls, b_cls, w_box, b_box, num_class):
    cls = jnp.einsum('oc,ncl->nol', w_cls, features) + b_cls[None, :, None]
    box = jnp.einsum('oc,ncl->nol', w_box, features) + b_box[None, :, None]
    cls, box = concat_box_prediction_layers(cls, box, num_class)
    return cat_res(cls, box)


def _bf16_representable(x):
    # Round demo inputs onto the bf16 grid so MXU precision mode cannot
    # perturb the kernel-vs-reference comparison.
    return x.astype(jnp.bfloat16).astype(jnp.float32)


if __name__ == "__main__":
    # Small shapes consistent with the module's forward.
    batch = 2
    in_channels = 32       # d_model
    length = 16            # L
    num_anchors = 4
    num_class = 3
    C = 1 + num_class
    c_cls = num_anchors * C            # 16
    c_box = num_anchors * 2 * C        # 32

    key = jax.random.PRNGKey(0)
    k0, k1, k2, k3, k4 = jax.random.split(key, 5)
    features = _bf16_representable(
        jax.random.normal(k0, (batch, in_channels, length), jnp.float32))
    w_cls = _bf16_representable(
        jax.random.normal(k1, (c_cls, in_channels), jnp.float32) * 0.1)
    b_cls = _bf16_representable(
        jax.random.normal(k2, (c_cls,), jnp.float32) * 0.1)
    w_box = _bf16_representable(
        jax.random.normal(k3, (c_box, in_channels), jnp.float32) * 0.1)
    b_box = _bf16_representable(
        jax.random.normal(k4, (c_box,), jnp.float32) * 0.1)

    fwd = jax.jit(functools.partial(roi_heads_forward, num_class=num_class))
    class_logits, box_regression = fwd(features, w_cls, b_cls, w_box, b_box)
    class_logits, box_regression = jax.block_until_ready(
        (class_logits, box_regression))

    ref_cls, ref_box = _reference(features, w_cls, b_cls, w_box, b_box,
                                  num_class)

    assert class_logits.shape == (batch * length * num_anchors, C)
    assert box_regression.shape == (batch * length * num_anchors, 2 * C)
    assert jnp.allclose(class_logits, ref_cls, atol=1e-3, rtol=1e-3), \
        "class_logits mismatch vs reference"
    assert jnp.allclose(box_regression, ref_box, atol=1e-3, rtol=1e-3), \
        "box_regression mismatch vs reference"

    print("KERNEL_OK")
</pallas_src>

<mosaic_0001>
module attributes {stable_mosaic.version = 11 : i64} {
  func.func @_roi_heads_pred_kernel(%arg0: i32, %arg1: i32, %arg2: memref<1x32x128xf32, #tpu.memory_space<vmem>>, %arg3: memref<48x32xf32, #tpu.memory_space<vmem>>, %arg4: memref<48x1xf32, #tpu.memory_space<vmem>>, %arg5: memref<1x16x128xf32, #tpu.memory_space<vmem>>, %arg6: memref<1x32x128xf32, #tpu.memory_space<vmem>>) attributes {dimension_semantics = [#tpu.dimension_semantics<parallel>, #tpu.dimension_semantics<parallel>], iteration_bounds = array<i64: 2, 1>, scalar_prefetch = 0 : i64, scratch_operands = 0 : i64, tpu.core_type = #tpu.core_type<tc>, window_params = [{transform_indices = @transform_0, window_bounds = array<i64: 1, 32, 128>}, {pipeline_mode = #tpu.pipeline_mode<synchronous>, transform_indices = @transform_1, window_bounds = array<i64: 48, 32>}, {pipeline_mode = #tpu.pipeline_mode<synchronous>, transform_indices = @transform_2, window_bounds = array<i64: 48, 1>}, {transform_indices = @transform_3, window_bounds = array<i64: 1, 16, 128>}, {transform_indices = @transform_4, window_bounds = array<i64: 1, 32, 128>}]} {
    %c0 = arith.constant 0 : index
    %c0_0 = arith.constant 0 : index
    %c0_1 = arith.constant 0 : index
    %0 = vector.load %arg2[%c0, %c0_0, %c0_1] : memref<1x32x128xf32, #tpu.memory_space<vmem>>, vector<1x32x128xf32>
    %1 = vector.shape_cast %0 : vector<1x32x128xf32> to vector<32x128xf32>
    %c0_2 = arith.constant 0 : index
    %c0_3 = arith.constant 0 : index
    %2 = vector.load %arg3[%c0_2, %c0_3] : memref<48x32xf32, #tpu.memory_space<vmem>>, vector<48x32xf32>
    %cst = arith.constant dense<0.000000e+00> : vector<48x128xf32>
    %3 = tpu.matmul %2, %1, %cst {dimension_numbers = #tpu.dot_dimension_numbers<[1], [0], [0], [1], [0, 0, 1, 1], [], []>} : vector<48x32xf32>, vector<32x128xf32>, vector<48x128xf32> -> vector<48x128xf32>
    %c0_4 = arith.constant 0 : index
    %c0_5 = arith.constant 0 : index
    %4 = vector.load %arg4[%c0_4, %c0_5] : memref<48x1xf32, #tpu.memory_space<vmem>>, vector<48x1xf32>
    %5 = vector.broadcast %4 : vector<48x1xf32> to vector<48x128xf32>
    %6 = arith.addf %3, %5 : vector<48x128xf32>
    %7 = vector.extract_strided_slice %6 {offsets = [0, 0], sizes = [16, 128], strides = [1, 1]} : vector<48x128xf32> to vector<16x128xf32>
    %c0_6 = arith.constant 0 : index
    %c0_7 = arith.constant 0 : index
    %c0_8 = arith.constant 0 : index
    %8 = vector.load %arg5[%c0_6, %c0_7, %c0_8] : memref<1x16x128xf32, #tpu.memory_space<vmem>>, vector<1x16x128xf32>
    %9 = vector.shape_cast %8 : vector<1x16x128xf32> to vector<16x128xf32>
    %10 = vector.shape_cast %7 : vector<16x128xf32> to vector<1x16x128xf32>
    tpu.vector_store %arg5[%c0_6, %c0_7, %c0_8], %10 {strides = array<i32>} : memref<1x16x128xf32, #tpu.memory_space<vmem>>, vector<1x16x128xf32>,
    %11 = vector.extract_strided_slice %6 {offsets = [16, 0], sizes = [32, 128], strides = [1, 1]} : vector<48x128xf32> to vector<32x128xf32>
    %c0_9 = arith.constant 0 : index
    %c0_10 = arith.constant 0 : index
    %c0_11 = arith.constant 0 : index
    %12 = vector.load %arg6[%c0_9, %c0_10, %c0_11] : memref<1x32x128xf32, #tpu.memory_space<vmem>>, vector<1x32x128xf32>
    %13 = vector.shape_cast %12 : vector<1x32x128xf32> to vector<32x128xf32>
    %14 = vector.shape_cast %11 : vector<32x128xf32> to vector<1x32x128xf32>
    tpu.vector_store %arg6[%c0_9, %c0_10, %c0_11], %14 {strides = array<i32>} : memref<1x32x128xf32, #tpu.memory_space<vmem>>, vector<1x32x128xf32>,
    return
  }
  func.func @transform_0(%arg0: i32, %arg1: i32) -> (i32, i32, i32) {
    %c0_i32 = arith.constant 0 : i32
    %c0_i32_0 = arith.constant 0 : i32
    return %arg0, %c0_i32, %arg1 : i32, i32, i32
  }
  func.func @transform_1(%arg0: i32, %arg1: i32) -> (i32, i32) {
    %c0_i32 = arith.constant 0 : i32
    %c0_i32_0 = arith.constant 0 : i32
    %c0_i32_1 = arith.constant 0 : i32
    return %c0_i32, %c0_i32_0 : i32, i32
  }
  func.func @transform_2(%arg0: i32, %arg1: i32) -> (i32, i32) {
    %c0_i32 = arith.constant 0 : i32
    %c0_i32_0 = arith.constant 0 : i32
    %c0_i32_1 = arith.constant 0 : i32
    return %c0_i32, %c0_i32_0 : i32, i32
  }
  func.func @transform_3(%arg0: i32, %arg1: i32) -> (i32, i32, i32) {
    %c0_i32 = arith.constant 0 : i32
    %c0_i32_0 = arith.constant 0 : i32
    return %arg0, %c0_i32, %arg1 : i32, i32, i32
  }
  func.func @transform_4(%arg0: i32, %arg1: i32) -> (i32, i32, i32) {
    %c0_i32 = arith.constant 0 : i32
    %c0_i32_0 = arith.constant 0 : i32
    return %arg0, %c0_i32, %arg1 : i32, i32, i32
  }
}

</mosaic_0001>

<llo_original>
// kernel: roi_heads_forward.1
$region0: #{roi_heads_forward.1}
  #allocation0 [shape = 'u32[]', space=smem, size = 0x4, offset = 0x4, fixed_abs, tag = 'smem constant byte address 0x4 - core index']
  #allocation1 [shape = 'u32[144,128]{1,0:T(1,128)}', space=vmem, size = 0x12000, scoped, tag = 'internal scratch']
  %s0 = inlined_call_operand.vmem [shape: f32[2,32,128], index: 0, kind: input, shape index: {}]
  %s1 = inlined_call_operand.vmem [shape: f32[48,32], index: 1, kind: input, shape index: {}]
  %s2 = inlined_call_operand.vmem [shape: f32[48,1], index: 2, kind: input, shape index: {}]
  %s3 = inlined_call_operand.vmem [shape: f32[2,16,128], index: 3, kind: output, shape index: {0}]
  %s4 = inlined_call_operand.vmem [shape: f32[2,32,128], index: 4, kind: output, shape index: {1}]
  %5 = xla_tuple %s3, %s4
  %s6 = sld [smem:[#allocation0]]
  $region53: #{roi_heads_forward.1} parent=0
    _
  %s8 = ssub.s32 1, %s6
  %s9 = scalar_select 0, %s8, %s6
  loop: start=0, step=1, limit=4
  $region2: #{roi_heads_forward.1} parent=0 // loop_pre_header
    _
  $region3: #{roi_heads_forward.1} parent=0 // loop_header
    %s11 = sphi 0, %s15
    %p12 = scmp.ge.s32.totalorder %s11, 4
    %s18 = sphi 0, %s30
    %s19 = sphi 0, %s26
    %s20 = sphi 0, %s18
    %s21 = sphi 0, %s19
    %s22 = sphi 0, %s20
    %s23 = sphi 0, %s21
    %s35 = sphi 0, %s37
    %s38 = sphi 0, %s35
    %s39 = sphi 0, %s38
    %s55 = sphi 0, %s39
    %s59 = sphi 0, %s59
    %s61 = sphi 0, %s59
    %s62 = sphi 0, %s61
    %s76 = sphi 0, %s62
    %s80 = sphi 0, %s80
    %s82 = sphi 0, %s80
    %s83 = sphi 0, %s82
    %s97 = sphi 0, %s83
    %s105 = sphi 0, %s107
    %s108 = sphi 0, %s105
    %s109 = sphi 0, %s108
    %s125 = sphi 0, %s109
    %s133 = sphi 0, %s135
    %s136 = sphi 0, %s133
    %s137 = sphi 0, %s136
    %s153 = sphi 0, %s137
  $region4: #{roi_heads_forward.1} parent=0 // loop_header_branch
    %14 = sbr.rel (%p12) target = $region8
  $region5: #{roi_heads_forward.1} parent=0 // loop_body
    %s16 = ssub.s32 %s11, 1
    %s17 = ssub.s32 %s11, 2
    %s24 = sadd.s32 1, %s19
    %p25 = scmp.ge.s32.totalorder %s24, 1
    %s26 = scalar_select %p25, 0, %s24
    %s27 = sadd.s32 1, %s18
    %s28 = scalar_select %p25, %s27, %s18
    %p29 = scmp.ge.s32.totalorder %s28, 2
    %s30 = scalar_select %p29, 0, %s28
    %s31 = ssub.s32 %s18, %s30
    %s32 = ssub.s32 %s19, %s26
    %s33 = sor.u32 %s31, %s32
    %p34 = scmp.eq.s32.totalorder %s33, 0
    %s36 = sadd.s32 %s35, 1
    %s37 = scalar_select %p34, %s35, %s36
    %p40 = pneg %p34
    %p41 = scmp.eq.s32.totalorder %s11, 1
    %p42 = por %p40, %p41
    %p43 = scmp.ne.s32.totalorder %s35, %s38
    %p44 = scmp.eq.s32.totalorder %s11, 0
    %p45 = por %p43, %p44
    %p46 = scmp.ne.s32.totalorder %s35, %s38
    %p47 = scmp.eq.s32.totalorder %s16, 1
    %p48 = por %p46, %p47
    %p49 = scmp.ne.s32.totalorder %s38, %s39
    %p50 = scmp.eq.s32.totalorder %s16, 0
    %p51 = por %p49, %p50
    %p52 = scmp.ne.s32.totalorder %s38, %s39
    %p53 = scmp.eq.s32.totalorder %s17, 1
    %p54 = por %p52, %p53
    %p56 = scmp.ne.s32.totalorder %s39, %s55
    %p57 = scmp.eq.s32.totalorder %s17, 0
    %p58 = por %p56, %p57
    %s60 = sadd.s32 %s59, 1
    %p63 = scmp.eq.s32.totalorder %s11, 1
    %p64 = scmp.ne.s32.totalorder %s59, %s61
    %p65 = scmp.eq.s32.totalorder %s11, 0
    %p66 = por %p64, %p65
    %p67 = scmp.ne.s32.totalorder %s59, %s61
    %p68 = scmp.eq.s32.totalorder %s16, 1
    %p69 = por %p67, %p68
    %p70 = scmp.ne.s32.totalorder %s61, %s62
    %p71 = scmp.eq.s32.totalorder %s16, 0
    %p72 = por %p70, %p71
    %p73 = scmp.ne.s32.totalorder %s61, %s62
    %p74 = scmp.eq.s32.totalorder %s17, 1
    %p75 = por %p73, %p74
    %p77 = scmp.ne.s32.totalorder %s62, %s76
    %p78 = scmp.eq.s32.totalorder %s17, 0
    %p79 = por %p77, %p78
    %s81 = sadd.s32 %s80, 1
    %p84 = scmp.eq.s32.totalorder %s11, 1
    %p85 = scmp.ne.s32.totalorder %s80, %s82
    %p86 = scmp.eq.s32.totalorder %s11, 0
    %p87 = por %p85, %p86
    %p88 = scmp.ne.s32.totalorder %s80, %s82
    %p89 = scmp.eq.s32.totalorder %s16, 1
    %p90 = por %p88, %p89
    %p91 = scmp.ne.s32.totalorder %s82, %s83
    %p92 = scmp.eq.s32.totalorder %s16, 0
    %p93 = por %p91, %p92
    %p94 = scmp.ne.s32.totalorder %s82, %s83
    %p95 = scmp.eq.s32.totalorder %s17, 1
    %p96 = por %p94, %p95
    %p98 = scmp.ne.s32.totalorder %s83, %s97
    %p99 = scmp.eq.s32.totalorder %s17, 0
    %p100 = por %p98, %p99
    %s101 = ssub.s32 %s18, %s30
    %s102 = ssub.s32 %s19, %s26
    %s103 = sor.u32 %s101, %s102
    %p104 = scmp.eq.s32.totalorder %s103, 0
    %s106 = sadd.s32 %s105, 1
    %s107 = scalar_select %p104, %s105, %s106
    %p110 = pneg %p104
    %p111 = scmp.eq.s32.totalorder %s11, 1
    %p112 = por %p110, %p111
    %p113 = scmp.ne.s32.totalorder %s105, %s108
    %p114 = scmp.eq.s32.totalorder %s11, 0
    %p115 = por %p113, %p114
    %p116 = scmp.ne.s32.totalorder %s105, %s108
    %p117 = scmp.eq.s32.totalorder %s16, 1
    %p118 = por %p116, %p117
    %p119 = scmp.ne.s32.totalorder %s108, %s109
    %p120 = scmp.eq.s32.totalorder %s16, 0
    %p121 = por %p119, %p120
    %p122 = scmp.ne.s32.totalorder %s108, %s109
    %p123 = scmp.eq.s32.totalorder %s17, 1
    %p124 = por %p122, %p123
    %p126 = scmp.ne.s32.totalorder %s109, %s125
    %p127 = scmp.eq.s32.totalorder %s17, 0
    %p128 = por %p126, %p127
    %s129 = ssub.s32 %s18, %s30
    %s130 = ssub.s32 %s19, %s26
    %s131 = sor.u32 %s129, %s130
    %p132 = scmp.eq.s32.totalorder %s131, 0
    %s134 = sadd.s32 %s133, 1
    %s135 = scalar_select %p132, %s133, %s134
    %p138 = pneg %p132
    %p139 = scmp.eq.s32.totalorder %s11, 1
    %p140 = por %p138, %p139
    %p141 = scmp.ne.s32.totalorder %s133, %s136
    %p142 = scmp.eq.s32.totalorder %s11, 0
    %p143 = por %p141, %p142
    %p144 = scmp.ne.s32.totalorder %s133, %s136
    %p145 = scmp.eq.s32.totalorder %s16, 1
    %p146 = por %p144, %p145
    %p147 = scmp.ne.s32.totalorder %s136, %s137
    %p148 = scmp.eq.s32.totalorder %s16, 0
    %p149 = por %p147, %p148
    %p150 = scmp.ne.s32.totalorder %s136, %s137
    %p151 = scmp.eq.s32.totalorder %s17, 1
    %p152 = por %p150, %p151
    %p154 = scmp.ne.s32.totalorder %s137, %s153
    %p155 = scmp.eq.s32.totalorder %s17, 0
    %p156 = por %p154, %p155
    %p157 = scmp.le.s32.totalorder 1, %s11
    %p158 = scmp.lt.s32.totalorder %s11, 3
    %p159 = pnand %p157, %p158
    %p160 = pneg %p159
    // Predicated region
    $region9: #{roi_heads_forward.1} parent=5 // pred_check
      _
    $region10: #{roi_heads_forward.1} parent=5 // pred_check_branch
      %162 = sbr.rel (%p159) target = $region12
    $region11: #{roi_heads_forward.1} parent=5 // pred_region
      %s163 = ssub.s32 %s11, 1
      // Predicated region
      $region13: #{roi_heads_forward.1} parent=11 // pred_check
        %p164 = pneg %p72
      $region14: #{roi_heads_forward.1} parent=11 // pred_check_branch
        %166 = sbr.rel (%p164) target = $region16
      $region15: #{roi_heads_forward.1} parent=11 // pred_region
        _
      $region16: #{roi_heads_forward.1} parent=11 // pred_fallthru
        _
      // Predicated region
      $region17: #{roi_heads_forward.1} parent=11 // pred_check
        %p167 = pneg %p93
      $region18: #{roi_heads_forward.1} parent=11 // pred_check_branch
        %169 = sbr.rel (%p167) target = $region20
      $region19: #{roi_heads_forward.1} parent=11 // pred_region
        _
      $region20: #{roi_heads_forward.1} parent=11 // pred_fallthru
        _
    $region12: #{roi_heads_forward.1} parent=5 // pred_fallthru
      _
    %p170 = scmp.lt.s32.totalorder %s11, 2
    // Predicated region
    $region21: #{roi_heads_forward.1} parent=5 // pred_check
      %p171 = pneg %p170
    $region22: #{roi_heads_forward.1} parent=5 // pred_check_branch
      %173 = sbr.rel (%p171) target = $region24
    $region23: #{roi_heads_forward.1} parent=5 // pred_region
      // Predicated region
      $region25: #{roi_heads_forward.1} parent=23 // pred_check
        %p174 = pneg %p45
      $region26: #{roi_heads_forward.1} parent=23 // pred_check_branch
        %176 = sbr.rel (%p174) target = $region28
      $region27: #{roi_heads_forward.1} parent=23 // pred_region
        %p177 = scmp.lt.s32.totalorder %s18, 1
        %s178 = scalar_select %p177, %s18, 1
        %p179 = scmp.lt.s32.totalorder %s19, 0
        %s180 = scalar_select %p179, %s19, 0
        %s181 = smul.addr %s178, 4
        %s182 = sadd.s32 %s180, %s181
        %s183 = smul.addr %s182, 8
        %s184 = scalar_lea.vmem %s0, %s183
      $region28: #{roi_heads_forward.1} parent=23 // pred_fallthru
        _
    $region24: #{roi_heads_forward.1} parent=5 // pred_fallthru
      _
    %p185 = scmp.le.s32.totalorder 1, %s11
    %p186 = scmp.lt.s32.totalorder %s11, 3
    %p187 = pnand %p185, %p186
    %p188 = pneg %p187
    // Predicated region
    $region29: #{roi_heads_forward.1} parent=5 // pred_check
      _
    $region30: #{roi_heads_forward.1} parent=5 // pred_check_branch
      %190 = sbr.rel (%p187) target = $region32
    $region31: #{roi_heads_forward.1} parent=5 // pred_region
      %s191 = ssub.s32 %s11, 1
      %p192 = scmp.lt.s32.totalorder %s20, 1
      %s193 = scalar_select %p192, %s20, 1
      %p194 = scmp.lt.s32.totalorder %s21, 0
      %s195 = scalar_select %p194, %s21, 0
      %s196 = smul.addr %s193, 4
      %s197 = sadd.s32 %s195, %s196
      %s198 = smul.addr %s197, 8
      %s199 = scalar_lea.vmem %s0, %s198
      %p200 = pneg %p51
      %p201 = pneg %p48
      %p202 = pneg %p72
      %p203 = pneg %p69
      %p204 = pneg %p93
      %p205 = pneg %p90
      %p206 = pneg %p121
      %p207 = pneg %p118
      %p208 = scmp.lt.s32.totalorder %s20, 1
      %s209 = scalar_select %p208, %s20, 1
      %p210 = scmp.lt.s32.totalorder %s21, 0
      %s211 = scalar_select %p210, %s21, 0
      %s212 = smul.addr %s209, 2
      %s213 = sadd.s32 %s211, %s212
      %s214 = smul.addr %s213, 8
      %s215 = scalar_lea.vmem %s3, %s214
      %p216 = pneg %p149
      %p217 = pneg %p146
      %p218 = scmp.lt.s32.totalorder %s20, 1
      %s219 = scalar_select %p218, %s20, 1
      %p220 = scmp.lt.s32.totalorder %s21, 0
      %s221 = scalar_select %p220, %s21, 0
      %s222 = smul.addr %s219, 4
      %s223 = sadd.s32 %s221, %s222
      %s224 = smul.addr %s223, 8
      %s225 = scalar_lea.vmem %s4, %s224
      %p226 = scmp.lt.s32.totalorder %s20, 1
      %s227 = scalar_select %p226, %s20, 1
      %p228 = scmp.lt.s32.totalorder %s21, 0
      %s229 = scalar_select %p228, %s21, 0
      %s230 = smul.addr %s227, 4
      %s231 = sadd.s32 %s229, %s230
      %s232 = smul.addr %s231, 8
      %s233 = scalar_lea.vmem %s0, %s232
      %p234 = scmp.lt.s32.totalorder %s20, 1
      %s235 = scalar_select %p234, %s20, 1
      %p236 = scmp.lt.s32.totalorder %s21, 0
      %s237 = scalar_select %p236, %s21, 0
      %s238 = smul.addr %s235, 2
      %s239 = sadd.s32 %s237, %s238
      %s240 = smul.addr %s239, 8
      %s241 = scalar_lea.vmem %s3, %s240
      %p242 = scmp.lt.s32.totalorder %s20, 1
      %s243 = scalar_select %p242, %s20, 1
      %p244 = scmp.lt.s32.totalorder %s21, 0
      %s245 = scalar_select %p244, %s21, 0
      %s246 = smul.addr %s243, 4
      %s247 = sadd.s32 %s245, %s246
      %s248 = smul.addr %s247, 8
      %s249 = scalar_lea.vmem %s4, %s248
      %v250 = vld [vmem:[%s233] sm:$0xff]
      %v251 = vld [vmem:[%s233 + $0x8] sm:$0xff]
      %v252 = vld [vmem:[%s233 + $0x10] sm:$0xff]
      %v253 = vld [vmem:[%s233 + $0x18] sm:$0xff]
      %v254 = vld [vmem:[%s1] sm:$0xff]
      %v255 = vld [vmem:[%s1 + $0x8] sm:$0xff]
      %v256 = vld [vmem:[%s1 + $0x10] sm:$0xff]
      %v257 = vld [vmem:[%s1 + $0x18] sm:$0xff]
      %v258 = vld [vmem:[%s1 + $0x20] sm:$0xff]
      %v259 = vld [vmem:[%s1 + $0x28] sm:$0xff]
      %v260 = vld [vmem:[%s2] sm:$0xff]
      %v261 = vld [vmem:[%s2 + $0x8] sm:$0xff]
      %v262 = vld [vmem:[%s2 + $0x10] sm:$0xff]
      %v263 = vld [vmem:[%s2 + $0x18] sm:$0xff]
      %v264 = vld [vmem:[%s2 + $0x20] sm:$0xff]
      %v265 = vld [vmem:[%s2 + $0x28] sm:$0xff]
      %267 = vset.pattern.permute.xlu0 0
      %268 = vperm.xlu0 %267, %v260
      %v269 = vpop.permute.xlu0 %268
      %272 = vset.pattern.permute.xlu0 0
      %273 = vperm.xlu0 %272, %v261
      %v274 = vpop.permute.xlu0 %273
      %277 = vset.pattern.permute.xlu0 0
      %278 = vperm.xlu0 %277, %v262
      %v279 = vpop.permute.xlu0 %278
      %282 = vset.pattern.permute.xlu0 0
      %283 = vperm.xlu0 %282, %v263
      %v284 = vpop.permute.xlu0 %283
      %287 = vset.pattern.permute.xlu0 0
      %288 = vperm.xlu0 %287, %v264
      %v289 = vpop.permute.xlu0 %288
      %292 = vset.pattern.permute.xlu0 0
      %293 = vperm.xlu0 %292, %v265
      %v294 = vpop.permute.xlu0 %293
      %vm296 = vcmask 261120
      %v298 = vsel %vm296, %v254, 0
      %v301 = vsel %vm296, %v255, 0
      %v304 = vsel %vm296, %v256, 0
      %v307 = vsel %vm296, %v257, 0
      %v310 = vsel %vm296, %v258, 0
      %v313 = vsel %vm296, %v259, 0
      %315 = vmatprep.subr.mxu0 0.0
      %316 = vmatpush1.msra.mxu0 %v250
      %317 = vmatprep.subr.mxu0 0.0
      %318 = vmatpush1.msra.mxu0 %v251
      %319 = vmatprep.subr.mxu0 0.0
      %320 = vmatpush1.msra.mxu0 %v252
      %321 = vmatprep.subr.mxu0 0.0
      %322 = vmatpush1.msra.mxu0 %v253
      %323 = vmatprep.subr.mxu0 0.0
      %324 = vmatpush1.msra.mxu0 0.0
      %325 = vmatprep.subr.mxu0 0.0
      %326 = vmatpush1.msra.mxu0 0.0
      %327 = vmatprep.subr.mxu0 0.0
      %328 = vmatpush1.msra.mxu0 0.0
      %329 = vmatprep.subr.mxu0 0.0
      %330 = vmatpush1.msra.mxu0 0.0
      %331 = vmatprep.subr.mxu0 0.0
      %332 = vmatpush1.msra.mxu0 0.0
      %333 = vmatprep.subr.mxu0 0.0
      %334 = vmatpush1.msra.mxu0 0.0
      %335 = vmatprep.subr.mxu0 0.0
      %336 = vmatpush1.msra.mxu0 0.0
      %337 = vmatprep.subr.mxu0 0.0
      %338 = vmatpush1.msra.mxu0 0.0
      %339 = vmatprep.subr.mxu0 0.0
      %340 = vmatpush1.msra.mxu0 0.0
      %341 = vmatprep.subr.mxu0 0.0
      %342 = vmatpush1.msra.mxu0 0.0
      %343 = vmatprep.subr.mxu0 0.0
      %344 = vmatpush1.msra.mxu0 0.0
      %345 = vmatprep.subr.mxu0 0.0
      %346 = vmatpush1.msra.mxu0 0.0
      %347 = vmatprep.subr.mxu0 0.0
      %348 = vmatpush1.msra.mxu0 0.0
      %349 = vmatprep.subr.mxu0 0.0
      %350 = vmatpush1.msra.mxu0 0.0
      %351 = vmatprep.subr.mxu0 0.0
      %352 = vmatpush1.msra.mxu0 0.0
      %353 = vmatprep.subr.mxu0 0.0
      %354 = vmatpush1.msra.mxu0 0.0
      %355 = vmatprep.subr.mxu0 0.0
      %356 = vmatpush1.msra.mxu0 0.0
      %357 = vmatprep.subr.mxu0 0.0
      %358 = vmatpush1.msra.mxu0 0.0
      %359 = vmatprep.subr.mxu0 0.0
      %360 = vmatpush1.msra.mxu0 0.0
      %361 = vmatprep.subr.mxu0 0.0
      %362 = vmatpush1.msra.mxu0 0.0
      %363 = vmatprep.subr.mxu0 0.0
      %364 = vmatpush1.msra.mxu0 0.0
      %365 = vmatprep.subr.mxu0 0.0
      %366 = vmatpush1.msra.mxu0 0.0
      %367 = vmatprep.subr.mxu0 0.0
      %368 = vmatpush1.msra.mxu0 0.0
      %369 = vmatprep.subr.mxu0 0.0
      %370 = vmatpush1.msra.mxu0 0.0
      %371 = vmatprep.subr.mxu0 0.0
      %372 = vmatpush1.msra.mxu0 0.0
      %373 = vmatprep.subr.mxu0 0.0
      %374 = vmatpush1.msra.mxu0 0.0
      %375 = vmatprep.subr.mxu0 0.0
      %376 = vmatpush1.msra.mxu0 0.0
      %377 = vmatprep.subr.mxu0 0.0
      %378 = vmatpush1.msra.mxu0 0.0
      %379 = vmatprep.mubr.f32.mxu0 0.0
      %380 = vmatmul.mubr.f32.gmra.mrb[0].mxu0 %v298
      %v381 = vpop.f32.mrb[0].mxu0
      %v382 = vadd.f32 %v269, %v381
      %v383 = vpop.f32.mrb[0].mxu0
      %384 = vmatprep.mubr.f32.mxu0 0.0
      %385 = vmatmul.mubr.f32.gmra.mrb[0].mxu0 %v301
      %v386 = vpop.f32.mrb[0].mxu0
      %v387 = vadd.f32 %v274, %v386
      %v388 = vpop.f32.mrb[0].mxu0
      %389 = vmatprep.mubr.f32.mxu0 0.0
      %390 = vmatmul.mubr.f32.gmra.mrb[0].mxu0 %v304
      %v391 = vpop.f32.mrb[0].mxu0
      %v392 = vadd.f32 %v279, %v391
      %v393 = vpop.f32.mrb[0].mxu0
      %394 = vmatprep.mubr.f32.mxu0 0.0
      %395 = vmatmul.mubr.f32.gmra.mrb[0].mxu0 %v307
      %v396 = vpop.f32.mrb[0].mxu0
      %v397 = vadd.f32 %v284, %v396
      %v398 = vpop.f32.mrb[0].mxu0
      %399 = vmatprep.mubr.f32.mxu0 0.0
      %400 = vmatmul.mubr.f32.gmra.mrb[0].mxu0 %v310
      %v401 = vpop.f32.mrb[0].mxu0
      %v402 = vadd.f32 %v289, %v401
      %v403 = vpop.f32.mrb[0].mxu0
      %404 = vmatprep.mubr.f32.mxu0 0.0
      %405 = vmatmul.mubr.f32.gmra.mrb[0].mxu0 %v313
      %v406 = vpop.f32.mrb[0].mxu0
      %v407 = vadd.f32 %v294, %v406
      %v408 = vpop.f32.mrb[0].mxu0
      %409 = vdwg.mxu0
      %410 = vst [vmem:[%s241] sm:$0xff] %v382
      %411 = vst [vmem:[%s241 + $0x8] sm:$0xff] %v387
      %412 = vst [vmem:[%s249] sm:$0xff] %v392
      %413 = vst [vmem:[%s249 + $0x8] sm:$0xff] %v397
      %414 = vst [vmem:[%s249 + $0x10] sm:$0xff] %v402
      %415 = vst [vmem:[%s249 + $0x18] sm:$0xff] %v407
      %p416 = scmp.lt.s32.totalorder %s20, 1
      %s417 = scalar_select %p416, %s20, 1
      %p418 = scmp.lt.s32.totalorder %s21, 0
      %s419 = scalar_select %p418, %s21, 0
      %s420 = smul.addr %s417, 2
      %s421 = sadd.s32 %s419, %s420
      %s422 = smul.addr %s421, 8
      %s423 = scalar_lea.vmem %s3, %s422
      %p424 = scmp.lt.s32.totalorder %s20, 1
      %s425 = scalar_select %p424, %s20, 1
      %p426 = scmp.lt.s32.totalorder %s21, 0
      %s427 = scalar_select %p426, %s21, 0
      %s428 = smul.addr %s425, 4
      %s429 = sadd.s32 %s427, %s428
      %s430 = smul.addr %s429, 8
      %s431 = scalar_lea.vmem %s4, %s430
      // Predicated region
      $region33: #{roi_heads_forward.1} parent=31 // pred_check
        %p432 = pneg %p118
      $region34: #{roi_heads_forward.1} parent=31 // pred_check_branch
        %434 = sbr.rel (%p432) target = $region36
      $region35: #{roi_heads_forward.1} parent=31 // pred_region
        _
      $region36: #{roi_heads_forward.1} parent=31 // pred_fallthru
        _
      // Predicated region
      $region37: #{roi_heads_forward.1} parent=31 // pred_check
        %p435 = pneg %p146
      $region38: #{roi_heads_forward.1} parent=31 // pred_check_branch
        %437 = sbr.rel (%p435) target = $region40
      $region39: #{roi_heads_forward.1} parent=31 // pred_region
        _
      $region40: #{roi_heads_forward.1} parent=31 // pred_fallthru
        _
    $region32: #{roi_heads_forward.1} parent=5 // pred_fallthru
      _
    %p438 = scmp.le.s32.totalorder 2, %s11
    // Predicated region
    $region41: #{roi_heads_forward.1} parent=5 // pred_check
      %p439 = pneg %p438
    $region42: #{roi_heads_forward.1} parent=5 // pred_check_branch
      %441 = sbr.rel (%p439) target = $region44
    $region43: #{roi_heads_forward.1} parent=5 // pred_region
      %s442 = ssub.s32 %s11, 2
      // Predicated region
      $region45: #{roi_heads_forward.1} parent=43 // pred_check
        %p443 = pneg %p124
      $region46: #{roi_heads_forward.1} parent=43 // pred_check_branch
        %445 = sbr.rel (%p443) target = $region48
      $region47: #{roi_heads_forward.1} parent=43 // pred_region
        %p446 = scmp.lt.s32.totalorder %s22, 1
        %s447 = scalar_select %p446, %s22, 1
        %p448 = scmp.lt.s32.totalorder %s23, 0
        %s449 = scalar_select %p448, %s23, 0
        %s450 = smul.addr %s447, 2
        %s451 = sadd.s32 %s449, %s450
        %s452 = smul.addr %s451, 8
        %s453 = scalar_lea.vmem %s3, %s452
      $region48: #{roi_heads_forward.1} parent=43 // pred_fallthru
        _
      // Predicated region
      $region49: #{roi_heads_forward.1} parent=43 // pred_check
        %p454 = pneg %p152
      $region50: #{roi_heads_forward.1} parent=43 // pred_check_branch
        %456 = sbr.rel (%p454) target = $region52
      $region51: #{roi_heads_forward.1} parent=43 // pred_region
        %p457 = scmp.lt.s32.totalorder %s22, 1
        %s458 = scalar_select %p457, %s22, 1
        %p459 = scmp.lt.s32.totalorder %s23, 0
        %s460 = scalar_select %p459, %s23, 0
        %s461 = smul.addr %s458, 4
        %s462 = sadd.s32 %s460, %s461
        %s463 = smul.addr %s462, 8
        %s464 = scalar_lea.vmem %s4, %s463
      $region52: #{roi_heads_forward.1} parent=43 // pred_fallthru
        _
    $region44: #{roi_heads_forward.1} parent=5 // pred_fallthru
      _
  $region6: #{roi_heads_forward.1} parent=0 // loop_footer
    %s15 = sadd.s32 1, %s11
  $region7: #{roi_heads_forward.1} parent=0 // loop_footer_branch
    %10 = sbr.rel target = $region3
  $region8: #{roi_heads_forward.1} parent=0 // loop_exit
    _

</llo_original>
